<compile_context>
chip_gen: v6e
topology: v6e:2x2x1
jax: 0.10.0
libtpu: 0.0.40
codegen_flags: <defaults>
</compile_context>

<pallas_src>
import functools

import jax
import jax.numpy as jnp
from jax.experimental import pallas as pl
from jax.experimental.pallas import tpu as pltpu


def _round_up(x: int, m: int) -> int:
    return (x + m - 1) // m * m


def _choose_tiling(n: int, row_tile: int):
    """Returns (N_pad, TN, num_tiles) with TN * num_tiles == N_pad."""
    if n <= row_tile:
        n_pad = _round_up(n, 128 if n >= 128 else 16)   # bf16 sublane pack / lanes
        return n_pad, n_pad, 1
    tn = _round_up(row_tile, 128)
    n_pad = _round_up(n, tn)
    return n_pad, tn, n_pad // tn


def _vmem_limit_from(est_bytes: int):
    """Explicit scoped-VMEM limit when the estimate exceeds the v5e default."""
    est = int(est_bytes * 1.4) + (2 << 20)
    if est <= (12 << 20):        # comfortably under every generation's default
        return None
    # TODO(synk): on v7x (64 MiB physical VMEM/TC) prefer shrinking row_tile
    # instead of pushing the limit much above ~48 MiB.
    return min(est, 100 << 20)


# ---------------------------------------------------------------------------
# Per-layer Pallas kernel: one (batch b, row-tile r) step of GraphConv.
# ---------------------------------------------------------------------------
def graph_conv_kernel(feat_ref, a_ref, wx_ref, wa_ref, bias_ref, out_ref):
    # feat_ref: (N_pad, D_pad) bf16  -- all node features (resident per batch)
    # a_ref:    (TN, N_pad)    bf16  -- row tile of the adjacency (streamed)
    # wx_ref:   (D_pad, F_pad) bf16  -- W[:D]  (the "x" half)
    # wa_ref:   (D_pad, F_pad) bf16  -- W[D:]  (the "A@x" half)
    # bias_ref: (1, F_pad)     f32
    # out_ref:  (TN, F_pad)
    tn = out_ref.shape[0]
    if feat_ref.shape[0] == tn:          # single row tile: no dynamic slice
        x_rows = feat_ref[...]
    else:
        row_start = pl.multiple_of(pl.program_id(1) * tn, tn)
        x_rows = feat_ref[pl.ds(row_start, tn), :]

    # MeanAggregator rows: agg = A[rows, :] @ features (MXU, f32 accumulation).
    agg = jnp.dot(a_ref[...], feat_ref[...], preferred_element_type=jnp.float32)

    # concat([x, A@x]) @ W == x @ W[:D] + (A@x) @ W[D:]  (two MXU passes).
    acc = jnp.dot(x_rows, wx_ref[...], preferred_element_type=jnp.float32)
    acc = acc + jnp.dot(agg.astype(wa_ref.dtype), wa_ref[...],
                        preferred_element_type=jnp.float32)
    acc = acc + bias_ref[...]
    out_ref[...] = jnp.maximum(acc, 0.0).astype(out_ref.dtype)


def graph_conv_padded(x_p, a_p, wx, wa, b_p, *, out_dtype, row_tile=512):
    """One GraphConv layer on already padded / bf16 inputs.

    x_p: (B, N_pad, D_pad), a_p: (B, N_pad, N_pad), wx/wa: (D_pad, F_pad),
    b_p: (1, F_pad) f32.  Returns (B, N_pad, F_pad) in out_dtype.
    """
    B, N_pad, D_pad = x_p.shape
    F_pad = wx.shape[1]
    assert wx.shape == (D_pad, F_pad) and wa.shape == (D_pad, F_pad)
    assert a_p.shape == (B, N_pad, N_pad) and b_p.shape == (1, F_pad)

    n_pad2, TN, num_tiles = _choose_tiling(N_pad, row_tile)
    assert n_pad2 == N_pad and TN * num_tiles == N_pad, (N_pad, TN, num_tiles)

    itm = x_p.dtype.itemsize
    est = (2 * TN * N_pad * itm                 # A row tile (double-buffered)
           + 2 * N_pad * D_pad * itm            # resident features
           + 2 * 2 * D_pad * F_pad * itm        # wx + wa
           + 2 * F_pad * 4                      # bias
           + 2 * TN * F_pad * jnp.dtype(out_dtype).itemsize
           + TN * (D_pad + F_pad) * 4 + TN * D_pad * itm)   # live intermediates

    return pl.pallas_call(
        graph_conv_kernel,
        out_shape=jax.ShapeDtypeStruct((B, N_pad, F_pad), out_dtype),
        grid=(B, num_tiles),
        in_specs=[
            # Resident full features for A @ x (and the x row tile).
            pl.BlockSpec((None, N_pad, D_pad), lambda b, r: (b, 0, 0)),
            # Row tile of A: the streamed, HBM-bound operand.
            pl.BlockSpec((None, TN, N_pad), lambda b, r: (b, r, 0)),
            # Weight halves + bias, resident across the whole grid.
            pl.BlockSpec((D_pad, F_pad), lambda b, r: (0, 0)),
            pl.BlockSpec((D_pad, F_pad), lambda b, r: (0, 0)),
            pl.BlockSpec((1, F_pad), lambda b, r: (0, 0)),
        ],
        out_specs=pl.BlockSpec((None, TN, F_pad), lambda b, r: (b, r, 0)),
        compiler_params=pltpu.CompilerParams(
            # Both axes independent -> megacore sharding on v7x.
            dimension_semantics=("parallel", "parallel"),
            vmem_limit_bytes=_vmem_limit_from(est)),
        # TODO(synk): single-buffer the resident inputs (pipeline_mode=
        # pl.Buffered(1)) to free VMEM for larger A row tiles on v7x.
    )(x_p, a_p, wx, wa, b_p)


def graph_conv(features, A, weight, bias, *, row_tile=512,
               compute_dtype=jnp.bfloat16, out_dtype=None):
    """Standalone GraphConv: relu(concat([x, A@x], -1) @ W + b), unpadded I/O."""
    B, N, D = features.shape
    assert weight.shape[0] == 2 * D
    F_out = weight.shape[1]
    out_dtype = out_dtype or features.dtype

    N_pad, _, _ = _choose_tiling(N, row_tile)
    D_pad = _round_up(D, 128)
    F_pad = _round_up(F_out, 128)

    f_p = jnp.pad(features.astype(compute_dtype),
                  ((0, 0), (0, N_pad - N), (0, D_pad - D)))
    a_p = jnp.pad(A.astype(compute_dtype),
                  ((0, 0), (0, N_pad - N), (0, N_pad - N)))
    wx = jnp.pad(weight[:D].astype(compute_dtype),
                 ((0, D_pad - D), (0, F_pad - F_out)))
    wa = jnp.pad(weight[D:].astype(compute_dtype),
                 ((0, D_pad - D), (0, F_pad - F_out)))
    b_p = jnp.pad(bias.astype(jnp.float32),
                  (0, F_pad - F_out)).reshape(1, F_pad)

    out = graph_conv_padded(f_p, a_p, wx, wa, b_p,
                            out_dtype=out_dtype, row_tile=row_tile)
    return out[:, :N, :F_out]


# ---------------------------------------------------------------------------
# Fused 4-layer GraphConv stack: A and the activations stay resident in VMEM,
# only the (small) weights are additionally streamed.  A is read from HBM once.
# ---------------------------------------------------------------------------
def _make_gcn_fused_kernel(num_layers):
    def kernel(*refs):
        feat_ref, a_ref = refs[0], refs[1]
        layer_refs = refs[2:2 + 3 * num_layers]
        out_ref = refs[2 + 3 * num_layers]

        a = a_ref[...]                  # (N_pad, N_pad) bf16, reused 4x
        x = feat_ref[...]               # (N_pad, D0_pad) bf16
        for l in range(num_layers):     # static unroll, shapes differ per layer
            wx_ref, wa_ref, b_ref = layer_refs[3 * l:3 * (l + 1)]
            agg = jnp.dot(a, x, preferred_element_type=jnp.float32)
            acc = jnp.dot(x, wx_ref[...], preferred_element_type=jnp.float32)
            acc = acc + jnp.dot(agg.astype(x.dtype), wa_ref[...],
                                preferred_element_type=jnp.float32)
            x = jnp.maximum(acc + b_ref[...], 0.0).astype(feat_ref.dtype)
        out_ref[...] = x.astype(out_ref.dtype)
    return kernel


def _gcn_convs_fused(x_p, a_p, packed, *, out_dtype, vmem_est):
    B, N_pad, D0_pad = x_p.shape
    F_last_pad = packed[-1][0].shape[1]

    in_specs = [
        pl.BlockSpec((None, N_pad, D0_pad), lambda b: (b, 0, 0)),
        pl.BlockSpec((None, N_pad, N_pad), lambda b: (b, 0, 0)),
    ]
    args = [x_p, a_p]
    for wx, wa, bp in packed:
        d_pad, f_pad = wx.shape
        in_specs += [pl.BlockSpec((d_pad, f_pad), lambda b: (0, 0)),
                     pl.BlockSpec((d_pad, f_pad), lambda b: (0, 0)),
                     pl.BlockSpec((1, f_pad), lambda b: (0, 0))]
        args += [wx, wa, bp]

    return pl.pallas_call(
        _make_gcn_fused_kernel(len(packed)),
        out_shape=jax.ShapeDtypeStruct((B, N_pad, F_last_pad), out_dtype),
        grid=(B,),
        in_specs=in_specs,
        out_specs=pl.BlockSpec((None, N_pad, F_last_pad), lambda b: (b, 0, 0)),
        compiler_params=pltpu.CompilerParams(
            dimension_semantics=("parallel",),
            vmem_limit_bytes=_vmem_limit_from(vmem_est)),
    )(*args)


def gcn_convs_pallas(x, A, conv_params, *, compute_dtype=jnp.bfloat16,
                     row_tile=512, fuse="auto"):
    """Runs the GraphConv stack.  Pads/casts A and the features ONCE, keeps the
    padded bf16 layout between layers, and fuses all layers into a single
    pallas_call when A + activations fit comfortably in VMEM."""
    B, N, D0 = x.shape
    N_pad, _, _ = _choose_tiling(N, row_tile)
    D0_pad = _round_up(D0, 128)

    x_p = jnp.pad(x.astype(compute_dtype),
                  ((0, 0), (0, N_pad - N), (0, D0_pad - D0)))
    a_p = jnp.pad(A.astype(compute_dtype),
                  ((0, 0), (0, N_pad - N), (0, N_pad - N)))

    packed = []
    for w, b in conv_params:
        d = w.shape[0] // 2
        f = w.shape[1]
        d_pad = _round_up(d, 128)
        f_pad = _round_up(f, 128)
        wx = jnp.pad(w[:d].astype(compute_dtype),
                     ((0, d_pad - d), (0, f_pad - f)))
        wa = jnp.pad(w[d:].astype(compute_dtype),
                     ((0, d_pad - d), (0, f_pad - f)))
        bp = jnp.pad(b.astype(jnp.float32), (0, f_pad - f)).reshape(1, f_pad)
        packed.append((wx, wa, bp))

    widths = [D0_pad] + [wx.shape[1] for wx, _, _ in packed]
    max_w = max(widths)
    itm = jnp.dtype(compute_dtype).itemsize
    fused_est = (2 * N_pad * N_pad * itm            # A (double-buffered)
                 + 2 * N_pad * D0_pad * itm         # input features
                 + sum(2 * (2 * wx.size * itm + bp.size * 4)
                       for wx, _, bp in packed)     # weights + biases
                 + 2 * N_pad * widths[-1] * itm     # output block
                 + N_pad * max_w * (2 * itm + 8))   # live x / agg / acc values

    do_fuse = fuse is True or (fuse == "auto" and fused_est <= (24 << 20))
    if do_fuse:
        out_p = _gcn_convs_fused(x_p, a_p, packed, out_dtype=compute_dtype,
                                 vmem_est=fused_est)
    else:
        for wx, wa, bp in packed:
            x_p = graph_conv_padded(x_p, a_p, wx, wa, bp,
                                    out_dtype=compute_dtype, row_tile=row_tile)
        out_p = x_p

    F_last = conv_params[-1][0].shape[1]
    return out_p[:, :N, :F_last].astype(jnp.float32)


# ---------------------------------------------------------------------------
# Pure-JAX references (mirror the kernel's bf16-operand / f32-accum policy).
# ---------------------------------------------------------------------------
def graph_conv_ref(features, A, weight, bias, compute_dtype=jnp.bfloat16,
                   out_dtype=None):
    f = features.astype(compute_dtype)
    a = A.astype(compute_dtype)
    w = weight.astype(compute_dtype)
    agg = jnp.einsum('bnm,bmd->bnd', a, f, preferred_element_type=jnp.float32)
    cat = jnp.concatenate([f, agg.astype(compute_dtype)], axis=2)
    out = jnp.einsum('bnd,df->bnf', cat, w, preferred_element_type=jnp.float32)
    out = jax.nn.relu(out + bias.astype(jnp.float32))
    return out.astype(out_dtype or features.dtype)


def graph_conv_ref_f32(features, A, weight, bias):
    agg = jnp.einsum('bnm,bmd->bnd', A, features)
    cat = jnp.concatenate([features, agg], axis=2)
    out = jnp.einsum('bnd,df->bnf', cat, weight)
    return jax.nn.relu(out + bias)


def gcn_convs_ref(x, A, conv_params, compute_dtype=jnp.bfloat16):
    h = x
    for w, b in conv_params:
        h = graph_conv_ref(h, A, w, b, compute_dtype=compute_dtype,
                           out_dtype=compute_dtype)
    return h.astype(jnp.float32)


# ---------------------------------------------------------------------------
# Full GCN forward (bn0 -> conv1..4 -> knn gather -> classifier).
# TODO(synk): bn0, the knn gather and the 64->32->2 classifier stay in plain
# JAX -- they are negligible next to the GraphConv matmuls.
# ---------------------------------------------------------------------------
def init_gcn_params(key, feat_len):
    conv_dims = [(feat_len, 512), (512, 256), (256, 128), (128, 64)]
    convs = []
    for din, dout in conv_dims:
        key, kw = jax.random.split(key)
        limit = (6.0 / (2 * din + dout)) ** 0.5          # xavier_uniform_
        w = jax.random.uniform(kw, (2 * din, dout), jnp.float32, -limit, limit)
        convs.append((w, jnp.zeros((dout,), jnp.float32)))

    def linear_init(k, din, dout):
        kw, kb = jax.random.split(k)
        lim = 1.0 / (din ** 0.5)
        w = jax.random.uniform(kw, (din, dout), jnp.float32, -lim, lim)
        b = jax.random.uniform(kb, (dout,), jnp.float32, -lim, lim)
        return w, b

    key, k1, k2 = jax.random.split(key, 3)
    return {
        "convs": convs,
        "fc1": linear_init(k1, 64, 32),
        "prelu": jnp.full((32,), 0.25, jnp.float32),
        "fc2": linear_init(k2, 32, 2),
    }


def gcn_forward(params, x, A, knn_inds, convs_fn):
    B, N, D = x.shape
    # bn0: BatchNorm1d(feat_len, affine=False), training-mode batch statistics.
    flat = x.reshape(-1, D)
    mean = flat.mean(axis=0)
    var = flat.var(axis=0)
    xn = ((flat - mean) / jnp.sqrt(var + 1e-5)).reshape(B, N, D)

    feat = convs_fn(xn, A, params["convs"])              # (B, N, 64) f32

    # edge_feat[g, i, :] = feat[g, knn_inds[g, i], :]
    edge_feat = jnp.take_along_axis(feat, knn_inds[..., None], axis=1)
    h = edge_feat.reshape(-1, feat.shape[-1])

    w1, b1 = params["fc1"]
    h = h @ w1 + b1
    h = jnp.where(h >= 0.0, h, params["prelu"] * h)      # PReLU(32)
    w2, b2 = params["fc2"]
    return h @ w2 + b2


if __name__ == "__main__":
    key = jax.random.PRNGKey(0)

    # ---- single GraphConv layer, multi-row-tile path (row_tile=128) ----
    B, N, D, F_out = 2, 200, 40, 96
    key, k_feat, k_a, k_w, k_b = jax.random.split(key, 5)
    features = jax.random.normal(k_feat, (B, N, D), dtype=jnp.float32)
    a_raw = jax.random.uniform(k_a, (B, N, N), dtype=jnp.float32)
    A = a_raw / jnp.sum(a_raw, axis=-1, keepdims=True)   # row-normalized adj
    limit = (6.0 / (2 * D + F_out)) ** 0.5
    weight = jax.random.uniform(k_w, (2 * D, F_out), jnp.float32, -limit, limit)
    bias = 0.1 * jax.random.normal(k_b, (F_out,), jnp.float32)

    out = jax.block_until_ready(
        graph_conv(features, A, weight, bias, row_tile=128))
    assert out.shape == (B, N, F_out)
    assert jnp.allclose(out, graph_conv_ref(features, A, weight, bias),
                        atol=1e-2, rtol=1e-2)
    assert jnp.allclose(out, graph_conv_ref_f32(features, A, weight, bias),
                        atol=1e-1, rtol=1e-1)

    # ---- full GCN forward: fused 4-layer kernel and per-layer fallback ----
    feat_len, num_graphs, num_nodes, k_knn = 32, 2, 8, 4
    key, kx, ka, kknn, kp = jax.random.split(key, 5)
    x = jax.random.normal(kx, (num_graphs, num_nodes, feat_len), jnp.float32)
    a_raw = jax.random.uniform(ka, (num_graphs, num_nodes, num_nodes),
                               jnp.float32)
    A2 = a_raw / jnp.sum(a_raw, axis=-1, keepdims=True)
    knn_inds = jax.random.randint(kknn, (num_graphs, k_knn), 0, num_nodes)
    params = init_gcn_params(kp, feat_len)

    pred_fused = jax.block_until_ready(
        gcn_forward(params, x, A2, knn_inds, gcn_convs_pallas))
    pred_layered = jax.block_until_ready(
        gcn_forward(params, x, A2, knn_inds,
                    functools.partial(gcn_convs_pallas, fuse=False)))
    pred_ref = gcn_forward(params, x, A2, knn_inds, gcn_convs_ref)

    assert pred_fused.shape == (num_graphs * k_knn, 2)
    assert jnp.allclose(pred_fused, pred_ref, atol=5e-2, rtol=5e-2)
    assert jnp.allclose(pred_layered, pred_ref, atol=5e-2, rtol=5e-2)

    print("KERNEL_OK")
</pallas_src>

<mosaic_0001>
module attributes {stable_mosaic.version = 11 : i64} {
  func.func @graph_conv_kernel(%arg0: i32, %arg1: i32, %arg2: memref<1x256x128xbf16, #tpu.memory_space<vmem>>, %arg3: memref<1x128x256xbf16, #tpu.memory_space<vmem>>, %arg4: memref<128x128xbf16, #tpu.memory_space<vmem>>, %arg5: memref<128x128xbf16, #tpu.memory_space<vmem>>, %arg6: memref<1x128xf32, #tpu.memory_space<vmem>>, %arg7: memref<1x128x128xf32, #tpu.memory_space<vmem>>) attributes {dimension_semantics = [#tpu.dimension_semantics<parallel>, #tpu.dimension_semantics<parallel>], iteration_bounds = array<i64: 2, 2>, scalar_prefetch = 0 : i64, scratch_operands = 0 : i64, tpu.core_type = #tpu.core_type<tc>, window_params = [{transform_indices = @transform_0, window_bounds = array<i64: 1, 256, 128>}, {transform_indices = @transform_1, window_bounds = array<i64: 1, 128, 256>}, {pipeline_mode = #tpu.pipeline_mode<synchronous>, transform_indices = @transform_2, window_bounds = array<i64: 128, 128>}, {pipeline_mode = #tpu.pipeline_mode<synchronous>, transform_indices = @transform_3, window_bounds = array<i64: 128, 128>}, {pipeline_mode = #tpu.pipeline_mode<synchronous>, transform_indices = @transform_4, window_bounds = array<i64: 1, 128>}, {transform_indices = @transform_5, window_bounds = array<i64: 1, 128, 128>}]} {
    %c128_i32 = arith.constant 128 : i32
    %0 = arith.muli %arg1, %c128_i32 : i32
    %1 = tpu.assume_multiple %0, 128 : i32
    %c0 = arith.constant 0 : index
    %2 = arith.index_cast %1 : i32 to index
    %c0_0 = arith.constant 0 : index
    %3 = vector.load %arg2[%c0, %2, %c0_0] : memref<1x256x128xbf16, #tpu.memory_space<vmem>>, vector<1x128x128xbf16>
    %4 = vector.shape_cast %3 : vector<1x128x128xbf16> to vector<128x128xbf16>
    %c0_1 = arith.constant 0 : index
    %c0_2 = arith.constant 0 : index
    %c0_3 = arith.constant 0 : index
    %5 = vector.load %arg3[%c0_1, %c0_2, %c0_3] : memref<1x128x256xbf16, #tpu.memory_space<vmem>>, vector<1x128x256xbf16>
    %6 = vector.shape_cast %5 : vector<1x128x256xbf16> to vector<128x256xbf16>
    %c0_4 = arith.constant 0 : index
    %c0_5 = arith.constant 0 : index
    %c0_6 = arith.constant 0 : index
    %7 = vector.load %arg2[%c0_4, %c0_5, %c0_6] : memref<1x256x128xbf16, #tpu.memory_space<vmem>>, vector<1x256x128xbf16>
    %8 = vector.shape_cast %7 : vector<1x256x128xbf16> to vector<256x128xbf16>
    %cst = arith.constant dense<0.000000e+00> : vector<128x128xf32>
    %9 = tpu.matmul %6, %8, %cst {dimension_numbers = #tpu.dot_dimension_numbers<[1], [0], [0], [1], [0, 0, 1, 1], [], []>} : vector<128x256xbf16>, vector<256x128xbf16>, vector<128x128xf32> -> vector<128x128xf32>
    %c0_7 = arith.constant 0 : index
    %c0_8 = arith.constant 0 : index
    %10 = vector.load %arg4[%c0_7, %c0_8] : memref<128x128xbf16, #tpu.memory_space<vmem>>, vector<128x128xbf16>
    %cst_9 = arith.constant dense<0.000000e+00> : vector<128x128xf32>
    %11 = tpu.matmul %4, %10, %cst_9 {dimension_numbers = #tpu.dot_dimension_numbers<[1], [0], [0], [1], [0, 0, 1, 1], [], []>} : vector<128x128xbf16>, vector<128x128xbf16>, vector<128x128xf32> -> vector<128x128xf32>
    %12 = arith.truncf %9 : vector<128x128xf32> to vector<128x128xbf16>
    %c0_10 = arith.constant 0 : index
    %c0_11 = arith.constant 0 : index
    %13 = vector.load %arg5[%c0_10, %c0_11] : memref<128x128xbf16, #tpu.memory_space<vmem>>, vector<128x128xbf16>
    %cst_12 = arith.constant dense<0.000000e+00> : vector<128x128xf32>
    %14 = tpu.matmul %12, %13, %cst_12 {dimension_numbers = #tpu.dot_dimension_numbers<[1], [0], [0], [1], [0, 0, 1, 1], [], []>} : vector<128x128xbf16>, vector<128x128xbf16>, vector<128x128xf32> -> vector<128x128xf32>
    %15 = arith.addf %11, %14 : vector<128x128xf32>
    %c0_13 = arith.constant 0 : index
    %c0_14 = arith.constant 0 : index
    %16 = vector.load %arg6[%c0_13, %c0_14] : memref<1x128xf32, #tpu.memory_space<vmem>>, vector<1x128xf32>
    %17 = vector.broadcast %16 : vector<1x128xf32> to vector<128x128xf32>
    %18 = arith.addf %15, %17 : vector<128x128xf32>
    %cst_15 = arith.constant 0.000000e+00 : f32
    %19 = vector.broadcast %cst_15 : f32 to vector<128x128xf32>
    %20 = arith.maximumf %18, %19 : vector<128x128xf32>
    %c0_16 = arith.constant 0 : index
    %c0_17 = arith.constant 0 : index
    %c0_18 = arith.constant 0 : index
    %21 = vector.load %arg7[%c0_16, %c0_17, %c0_18] : memref<1x128x128xf32, #tpu.memory_space<vmem>>, vector<1x128x128xf32>
    %22 = vector.shape_cast %21 : vector<1x128x128xf32> to vector<128x128xf32>
    %23 = vector.shape_cast %20 : vector<128x128xf32> to vector<1x128x128xf32>
    tpu.vector_store %arg7[%c0_16, %c0_17, %c0_18], %23 {strides = array<i32>} : memref<1x128x128xf32, #tpu.memory_space<vmem>>, vector<1x128x128xf32>,
    return
  }
  func.func @transform_0(%arg0: i32, %arg1: i32) -> (i32, i32, i32) {
    %c0_i32 = arith.constant 0 : i32
    %c0_i32_0 = arith.constant 0 : i32
    %c0_i32_1 = arith.constant 0 : i32
    return %arg0, %c0_i32, %c0_i32_0 : i32, i32, i32
  }
  func.func @transform_1(%arg0: i32, %arg1: i32) -> (i32, i32, i32) {
    %c0_i32 = arith.constant 0 : i32
    %c0_i32_0 = arith.constant 0 : i32
    return %arg0, %arg1, %c0_i32 : i32, i32, i32
  }
  func.func @transform_2(%arg0: i32, %arg1: i32) -> (i32, i32) {
    %c0_i32 = arith.constant 0 : i32
    %c0_i32_0 = arith.constant 0 : i32
    %c0_i32_1 = arith.constant 0 : i32
    return %c0_i32, %c0_i32_0 : i32, i32
  }
  func.func @transform_3(%arg0: i32, %arg1: i32) -> (i32, i32) {
    %c0_i32 = arith.constant 0 : i32
    %c0_i32_0 = arith.constant 0 : i32
    %c0_i32_1 = arith.constant 0 : i32
    return %c0_i32, %c0_i32_0 : i32, i32
  }
  func.func @transform_4(%arg0: i32, %arg1: i32) -> (i32, i32) {
    %c0_i32 = arith.constant 0 : i32
    %c0_i32_0 = arith.constant 0 : i32
    %c0_i32_1 = arith.constant 0 : i32
    return %c0_i32, %c0_i32_0 : i32, i32
  }
  func.func @transform_5(%arg0: i32, %arg1: i32) -> (i32, i32, i32) {
    %c0_i32 = arith.constant 0 : i32
    %c0_i32_0 = arith.constant 0 : i32
    return %arg0, %arg1, %c0_i32 : i32, i32, i32
  }
}

</mosaic_0001>

<llo_original>
// kernel: tpu_custom_call.1
$region0: #{tpu_custom_call.1}
  #allocation0 [shape = 'u32[]', space=smem, size = 0x4, offset = 0x4, fixed_abs, tag = 'smem constant byte address 0x4 - core index']
  #allocation1 [shape = 'u32[144,128]{1,0:T(1,128)}', space=vmem, size = 0x12000, scoped, tag = 'internal scratch']
  %s0 = inlined_call_operand.hbm [shape: bf16[2,256,128], index: 0, kind: input, shape index: {}]
  %s1 = inlined_call_operand.hbm [shape: bf16[2,256,256], index: 1, kind: input, shape index: {}]
  %s2 = inlined_call_operand.hbm [shape: bf16[128,128], index: 2, kind: input, shape index: {}]
  %s3 = inlined_call_operand.hbm [shape: bf16[128,128], index: 3, kind: input, shape index: {}]
  %s4 = inlined_call_operand.vmem [shape: f32[1,128], index: 4, kind: input, shape index: {}]
  %s5 = inlined_call_operand.hbm [shape: f32[2,256,128], index: 5, kind: output, shape index: {}]
  %s6 = sld [smem:[#allocation0]]
  $region69: #{tpu_custom_call.1} parent=0
    _
  %s8 = ssub.s32 1, %s6
  %s9 = scalar_select 0, %s8, %s6
  $region1: #{tpu_custom_call.1} parent=0
    #allocation2 [shape = 'u8[131072]{0}', space=vmem, size = 0x20000, scoped, tag = 'input window, operand 0']
    #allocation3 [shape = 's32[2]{0}', space=sflag, size = 0x8, scoped, tag = 'scoped memory for tpu_custom_call.1']
    #allocation4 [shape = 's32[2]{0}', space=sflag, size = 0x8, scoped, tag = 'scoped memory for tpu_custom_call.1']
    #allocation5 [shape = 'u8[131072]{0}', space=vmem, size = 0x20000, scoped, tag = 'input window, operand 1']
    #allocation6 [shape = 's32[2]{0}', space=sflag, size = 0x8, scoped, tag = 'scoped memory for tpu_custom_call.1']
    #allocation7 [shape = 'u8[32768]{0}', space=vmem, size = 0x8000, scoped, tag = 'input window, operand 2, single buffered']
    #allocation8 [shape = 'u8[32768]{0}', space=vmem, size = 0x8000, scoped, tag = 'input window, operand 3, single buffered']
    #allocation9 [shape = 's32[1]{0}', space=sflag, size = 0x4, scoped, tag = 'scoped memory for tpu_custom_call.1']
    #allocation10 [shape = 'u8[131072]{0}', space=vmem, size = 0x20000, scoped, tag = 'output window, operand 0']
    %10 = vsyncpa [#allocation3], 0
    %s11 = scalar_lea.sflag [#allocation3], 1
    %12 = vsyncpa %s11, 0
    %13 = vsyncpa [#allocation6], 0
    %s14 = scalar_lea.sflag [#allocation6], 1
    %15 = vsyncpa %s14, 0
    %16 = vsyncpa [#allocation9], 0
    %17 = vsyncpa [#allocation4], 0
    %s18 = scalar_lea.sflag [#allocation4], 1
    %19 = vsyncpa %s18, 0
    loop: start=0, step=1, limit=6
    $region2: #{tpu_custom_call.1} parent=1 // loop_pre_header
      _
    $region3: #{tpu_custom_call.1} parent=1 // loop_header
      %s21 = sphi 0, %s25
      %p22 = scmp.ge.s32.totalorder %s21, 6
      %s28 = sphi 0, %s40
      %s29 = sphi 0, %s36
      %s30 = sphi 0, %s28
      %s31 = sphi 0, %s29
      %s32 = sphi 0, %s30
      %s33 = sphi 0, %s31
      %s43 = sphi 0, %s45
      %s46 = sphi 0, %s43
      %s47 = sphi 0, %s46
      %s63 = sphi 0, %s47
      %s71 = sphi 0, %s73
      %s74 = sphi 0, %s71
      %s75 = sphi 0, %s74
      %s91 = sphi 0, %s75
      %s95 = sphi 0, %s95
      %s97 = sphi 0, %s95
      %s98 = sphi 0, %s97
      %s112 = sphi 0, %s98
      %s116 = sphi 0, %s116
      %s118 = sphi 0, %s116
      %s119 = sphi 0, %s118
      %s133 = sphi 0, %s119
      %s137 = sphi 0, %s137
      %s139 = sphi 0, %s137
      %s140 = sphi 0, %s139
      %s154 = sphi 0, %s140
      %s162 = sphi 0, %s164
      %s165 = sphi 0, %s162
      %s166 = sphi 0, %s165
      %s182 = sphi 0, %s166
    $region4: #{tpu_custom_call.1} parent=1 // loop_header_branch
      %24 = sbr.rel (%p22) target = $region8
    $region5: #{tpu_custom_call.1} parent=1 // loop_body
      %s26 = ssub.s32 %s21, 1
      %s27 = ssub.s32 %s21, 2
      %s34 = sadd.s32 1, %s29
      %p35 = scmp.ge.s32.totalorder %s34, 2
      %s36 = scalar_select %p35, 0, %s34
      %s37 = sadd.s32 1, %s28
      %s38 = scalar_select %p35, %s37, %s28
      %p39 = scmp.ge.s32.totalorder %s38, 2
      %s40 = scalar_select %p39, 0, %s38
      %s41 = ssub.s32 %s28, %s40
      %p42 = scmp.eq.s32.totalorder %s41, 0
      %s44 = sadd.s32 %s43, 1
      %s45 = scalar_select %p42, %s43, %s44
      %p48 = pneg %p42
      %p49 = scmp.eq.s32.totalorder %s21, 3
      %p50 = por %p48, %p49
      %p51 = scmp.ne.s32.totalorder %s43, %s46
      %p52 = scmp.eq.s32.totalorder %s21, 0
      %p53 = por %p51, %p52
      %p54 = scmp.ne.s32.totalorder %s43, %s46
      %p55 = scmp.eq.s32.totalorder %s26, 3
      %p56 = por %p54, %p55
      %p57 = scmp.ne.s32.totalorder %s46, %s47
      %p58 = scmp.eq.s32.totalorder %s26, 0
      %p59 = por %p57, %p58
      %p60 = scmp.ne.s32.totalorder %s46, %s47
      %p61 = scmp.eq.s32.totalorder %s27, 3
      %p62 = por %p60, %p61
      %p64 = scmp.ne.s32.totalorder %s47, %s63
      %p65 = scmp.eq.s32.totalorder %s27, 0
      %p66 = por %p64, %p65
      %s67 = ssub.s32 %s28, %s40
      %s68 = ssub.s32 %s29, %s36
      %s69 = sor.u32 %s67, %s68
      %p70 = scmp.eq.s32.totalorder %s69, 0
      %s72 = sadd.s32 %s71, 1
      %s73 = scalar_select %p70, %s71, %s72
      %p76 = pneg %p70
      %p77 = scmp.eq.s32.totalorder %s21, 3
      %p78 = por %p76, %p77
      %p79 = scmp.ne.s32.totalorder %s71, %s74
      %p80 = scmp.eq.s32.totalorder %s21, 0
      %p81 = por %p79, %p80
      %p82 = scmp.ne.s32.totalorder %s71, %s74
      %p83 = scmp.eq.s32.totalorder %s26, 3
      %p84 = por %p82, %p83
      %p85 = scmp.ne.s32.totalorder %s74, %s75
      %p86 = scmp.eq.s32.totalorder %s26, 0
      %p87 = por %p85, %p86
      %p88 = scmp.ne.s32.totalorder %s74, %s75
      %p89 = scmp.eq.s32.totalorder %s27, 3
      %p90 = por %p88, %p89
      %p92 = scmp.ne.s32.totalorder %s75, %s91
      %p93 = scmp.eq.s32.totalorder %s27, 0
      %p94 = por %p92, %p93
      %s96 = sadd.s32 %s95, 1
      %p99 = scmp.eq.s32.totalorder %s21, 3
      %p100 = scmp.ne.s32.totalorder %s95, %s97
      %p101 = scmp.eq.s32.totalorder %s21, 0
      %p102 = por %p100, %p101
      %p103 = scmp.ne.s32.totalorder %s95, %s97
      %p104 = scmp.eq.s32.totalorder %s26, 3
      %p105 = por %p103, %p104
      %p106 = scmp.ne.s32.totalorder %s97, %s98
      %p107 = scmp.eq.s32.totalorder %s26, 0
      %p108 = por %p106, %p107
      %p109 = scmp.ne.s32.totalorder %s97, %s98
      %p110 = scmp.eq.s32.totalorder %s27, 3
      %p111 = por %p109, %p110
      %p113 = scmp.ne.s32.totalorder %s98, %s112
      %p114 = scmp.eq.s32.totalorder %s27, 0
      %p115 = por %p113, %p114
      %s117 = sadd.s32 %s116, 1
      %p120 = scmp.eq.s32.totalorder %s21, 3
      %p121 = scmp.ne.s32.totalorder %s116, %s118
      %p122 = scmp.eq.s32.totalorder %s21, 0
      %p123 = por %p121, %p122
      %p124 = scmp.ne.s32.totalorder %s116, %s118
      %p125 = scmp.eq.s32.totalorder %s26, 3
      %p126 = por %p124, %p125
      %p127 = scmp.ne.s32.totalorder %s118, %s119
      %p128 = scmp.eq.s32.totalorder %s26, 0
      %p129 = por %p127, %p128
      %p130 = scmp.ne.s32.totalorder %s118, %s119
      %p131 = scmp.eq.s32.totalorder %s27, 3
      %p132 = por %p130, %p131
      %p134 = scmp.ne.s32.totalorder %s119, %s133
      %p135 = scmp.eq.s32.totalorder %s27, 0
      %p136 = por %p134, %p135
      %s138 = sadd.s32 %s137, 1
      %p141 = scmp.eq.s32.totalorder %s21, 3
      %p142 = scmp.ne.s32.totalorder %s137, %s139
      %p143 = scmp.eq.s32.totalorder %s21, 0
      %p144 = por %p142, %p143
      %p145 = scmp.ne.s32.totalorder %s137, %s139
      %p146 = scmp.eq.s32.totalorder %s26, 3
      %p147 = por %p145, %p146
      %p148 = scmp.ne.s32.totalorder %s139, %s140
      %p149 = scmp.eq.s32.totalorder %s26, 0
      %p150 = por %p148, %p149
      %p151 = scmp.ne.s32.totalorder %s139, %s140
      %p152 = scmp.eq.s32.totalorder %s27, 3
      %p153 = por %p151, %p152
      %p155 = scmp.ne.s32.totalorder %s140, %s154
      %p156 = scmp.eq.s32.totalorder %s27, 0
      %p157 = por %p155, %p156
      %s158 = ssub.s32 %s28, %s40
      %s159 = ssub.s32 %s29, %s36
      %s160 = sor.u32 %s158, %s159
      %p161 = scmp.eq.s32.totalorder %s160, 0
      %s163 = sadd.s32 %s162, 1
      %s164 = scalar_select %p161, %s162, %s163
      %p167 = pneg %p161
      %p168 = scmp.eq.s32.totalorder %s21, 3
      %p169 = por %p167, %p168
      %p170 = scmp.ne.s32.totalorder %s162, %s165
      %p171 = scmp.eq.s32.totalorder %s21, 0
      %p172 = por %p170, %p171
      %p173 = scmp.ne.s32.totalorder %s162, %s165
      %p174 = scmp.eq.s32.totalorder %s26, 3
      %p175 = por %p173, %p174
      %p176 = scmp.ne.s32.totalorder %s165, %s166
      %p177 = scmp.eq.s32.totalorder %s26, 0
      %p178 = por %p176, %p177
      %p179 = scmp.ne.s32.totalorder %s165, %s166
      %p180 = scmp.eq.s32.totalorder %s27, 3
      %p181 = por %p179, %p180
      %p183 = scmp.ne.s32.totalorder %s166, %s182
      %p184 = scmp.eq.s32.totalorder %s27, 0
      %p185 = por %p183, %p184
      %p186 = scmp.le.s32.totalorder 1, %s21
      %p187 = scmp.lt.s32.totalorder %s21, 5
      %p188 = pnand %p186, %p187
      %p189 = pneg %p188
      // Predicated region
      $region9: #{tpu_custom_call.1} parent=5 // pred_check
        _
      $region10: #{tpu_custom_call.1} parent=5 // pred_check_branch
        %191 = sbr.rel (%p188) target = $region12
      $region11: #{tpu_custom_call.1} parent=5 // pred_region
        %s192 = ssub.s32 %s21, 1
        // Predicated region
        $region13: #{tpu_custom_call.1} parent=11 // pred_check
          %p193 = pneg %p108
        $region14: #{tpu_custom_call.1} parent=11 // pred_check_branch
          %195 = sbr.rel (%p193) target = $region16
        $region15: #{tpu_custom_call.1} parent=11 // pred_region
          %s197 = ssub.s32 1024, 1024
          %198 = vsyncadd [#allocation6], %s197
          %s199 = sshll.u32 [#allocation7], 4
          %s200 = int_to_ptr.vmem [resolvable:$true] %s199
          %205 = dma.hbm_to_vmem [thread:$0]  %s2, 1024, %s200, [#allocation6], 64, 64, 4
        $region16: #{tpu_custom_call.1} parent=11 // pred_fallthru
          _
        // Predicated region
        $region17: #{tpu_custom_call.1} parent=11 // pred_check
          %p206 = pneg %p129
        $region18: #{tpu_custom_call.1} parent=11 // pred_check_branch
          %208 = sbr.rel (%p206) target = $region20
        $region19: #{tpu_custom_call.1} parent=11 // pred_region
          %s210 = ssub.s32 1024, 1024
          %211 = vsyncadd [#allocation9], %s210
          %s212 = sshll.u32 [#allocation8], 4
          %s213 = int_to_ptr.vmem [resolvable:$true] %s212
          %218 = dma.hbm_to_vmem [thread:$0]  %s3, 1024, %s213, [#allocation9], 64, 64, 4
        $region20: #{tpu_custom_call.1} parent=11 // pred_fallthru
          _
        // Predicated region
        $region21: #{tpu_custom_call.1} parent=11 // pred_check
          %p219 = pneg %p150
        $region22: #{tpu_custom_call.1} parent=11 // pred_check_branch
          %221 = sbr.rel (%p219) target = $region24
        $region23: #{tpu_custom_call.1} parent=11 // pred_region
          _
        $region24: #{tpu_custom_call.1} parent=11 // pred_fallthru
          _
      $region12: #{tpu_custom_call.1} parent=5 // pred_fallthru
        _
      %p222 = scmp.lt.s32.totalorder %s21, 4
      // Predicated region
      $region25: #{tpu_custom_call.1} parent=5 // pred_check
        %p223 = pneg %p222
      $region26: #{tpu_custom_call.1} parent=5 // pred_check_branch
        %225 = sbr.rel (%p223) target = $region28
      $region27: #{tpu_custom_call.1} parent=5 // pred_region
        // Predicated region
        $region29: #{tpu_custom_call.1} parent=27 // pred_check
          %p226 = pneg %p53
        $region30: #{tpu_custom_call.1} parent=27 // pred_check_branch
          %228 = sbr.rel (%p226) target = $region32
        $region31: #{tpu_custom_call.1} parent=27 // pred_region
          %s229 = sand.u32 %s43, 1
          %s230 = scalar_lea.sflag [#allocation3], %s229
          %s231 = sand.u32 %s43, 1
          %s232 = smul.addr %s231, 128
          %s233 = scalar_lea.vmem [#allocation2], %s232
          %s235 = ssub.s32 2048, 2048
          %236 = vsyncadd %s230, %s235
          %s237 = smul.addr %s28, 32
          %s238 = smul.addr %s237, 64
          %s239 = scalar_lea.hbm %s0, %s238
          %s240 = sshll.u32 %s233, 4
          %s241 = int_to_ptr.vmem [resolvable:$true] %s240
          %246 = dma.hbm_to_vmem [thread:$0]  %s239, 2048, %s241, %s230, 64, 64, 4
        $region32: #{tpu_custom_call.1} parent=27 // pred_fallthru
          _
        // Predicated region
        $region33: #{tpu_custom_call.1} parent=27 // pred_check
          %p247 = pneg %p81
        $region34: #{tpu_custom_call.1} parent=27 // pred_check_branch
          %249 = sbr.rel (%p247) target = $region36
        $region35: #{tpu_custom_call.1} parent=27 // pred_region
          %s250 = sand.u32 %s21, 1
          %s251 = scalar_lea.sflag [#allocation6], %s250
          %s252 = sand.u32 %s71, 1
          %s253 = smul.addr %s252, 128
          %s254 = scalar_lea.vmem [#allocation5], %s253
          %s255 = smul.u32 16, %s29
          %s257 = ssub.s32 2048, 2048
          %258 = vsyncadd %s251, %s257
          %s259 = smul.addr %s255, 2
          %s260 = smul.addr %s28, 64
          %s261 = sadd.s32 %s259, %s260
          %s262 = smul.addr %s261, 64
          %s263 = scalar_lea.hbm %s1, %s262
          %s264 = sshll.u32 %s254, 4
          %s265 = int_to_ptr.vmem [resolvable:$true] %s264
          %270 = dma.hbm_to_vmem [thread:$0]  %s263, 2048, %s265, %s251, 128, 128, 8
        $region36: #{tpu_custom_call.1} parent=27 // pred_fallthru
          _
      $region28: #{tpu_custom_call.1} parent=5 // pred_fallthru
        _
      %p271 = scmp.le.s32.totalorder 1, %s21
      %p272 = scmp.lt.s32.totalorder %s21, 5
      %p273 = pnand %p271, %p272
      %p274 = pneg %p273
      // Predicated region
      $region37: #{tpu_custom_call.1} parent=5 // pred_check
        _
      $region38: #{tpu_custom_call.1} parent=5 // pred_check_branch
        %276 = sbr.rel (%p273) target = $region40
      $region39: #{tpu_custom_call.1} parent=5 // pred_region
        %s277 = ssub.s32 %s21, 1
        %s278 = sand.u32 %s46, 1
        %s279 = scalar_lea.sflag [#allocation3], %s278
        %s280 = sand.u32 %s46, 1
        %s281 = smul.addr %s280, 128
        %s282 = scalar_lea.vmem [#allocation2], %s281
        // Predicated region
        $region41: #{tpu_custom_call.1} parent=39 // pred_check
          %p283 = pneg %p59
        $region42: #{tpu_custom_call.1} parent=39 // pred_check_branch
          %285 = sbr.rel (%p283) target = $region44
        $region43: #{tpu_custom_call.1} parent=39 // pred_region
          %286 = dma.done %s279, 2048
        $region44: #{tpu_custom_call.1} parent=39 // pred_fallthru
          _
        %s287 = sand.u32 %s26, 1
        %s288 = scalar_lea.sflag [#allocation6], %s287
        %s289 = sand.u32 %s74, 1
        %s290 = smul.addr %s289, 128
        %s291 = scalar_lea.vmem [#allocation5], %s290
        // Predicated region
        $region45: #{tpu_custom_call.1} parent=39 // pred_check
          %p292 = pneg %p87
        $region46: #{tpu_custom_call.1} parent=39 // pred_check_branch
          %294 = sbr.rel (%p292) target = $region48
        $region47: #{tpu_custom_call.1} parent=39 // pred_region
          %295 = dma.done %s288, 2048
        $region48: #{tpu_custom_call.1} parent=39 // pred_fallthru
          _
        // Predicated region
        $region49: #{tpu_custom_call.1} parent=39 // pred_check
          %p296 = pneg %p108
        $region50: #{tpu_custom_call.1} parent=39 // pred_check_branch
          %298 = sbr.rel (%p296) target = $region52
        $region51: #{tpu_custom_call.1} parent=39 // pred_region
          %299 = dma.done [#allocation6], 1024
        $region52: #{tpu_custom_call.1} parent=39 // pred_fallthru
          _
        // Predicated region
        $region53: #{tpu_custom_call.1} parent=39 // pred_check
          %p300 = pneg %p129
        $region54: #{tpu_custom_call.1} parent=39 // pred_check_branch
          %302 = sbr.rel (%p300) target = $region56
        $region55: #{tpu_custom_call.1} parent=39 // pred_region
          %303 = dma.done [#allocation9], 1024
        $region56: #{tpu_custom_call.1} parent=39 // pred_fallthru
          _
        %s304 = sand.u32 %s46, 1
        %s305 = scalar_lea.sflag [#allocation3], %s304
        %s306 = sand.u32 %s46, 1
        %s307 = smul.addr %s306, 128
        %s308 = scalar_lea.vmem [#allocation2], %s307
        %p309 = pneg %p59
        %p310 = pneg %p56
        %s311 = sand.u32 %s26, 1
        %s312 = scalar_lea.sflag [#allocation6], %s311
        %s313 = sand.u32 %s74, 1
        %s314 = smul.addr %s313, 128
        %s315 = scalar_lea.vmem [#allocation5], %s314
        %p316 = pneg %p87
        %p317 = pneg %p84
        %p318 = pneg %p108
        %p319 = pneg %p105
        %p320 = pneg %p129
        %p321 = pneg %p126
        %p322 = pneg %p150
        %p323 = pneg %p147
        %p324 = pneg %p178
        %p325 = pneg %p175
        %s326 = sand.u32 %s165, 1
        %s327 = scalar_lea.sflag [#allocation4], %s326
        %s328 = sand.u32 %s165, 1
        %s329 = smul.addr %s328, 128
        %s330 = scalar_lea.vmem [#allocation10], %s329
        %s331 = smul.u32 16, %s31
        %s332 = smul.u32 16, %s31
        %s334 = smul.u32 %s31, 128
        %s335 = sshra.s32 %s334, 3
        %s336 = sand.u32 %s334, 7
        %s337 = smul.addr %s335, 4
        %s338 = scalar_lea.vmem %s282, %s337 [#allocation2]
        %v339 = vld [vmem:[%s338] sm:$0xf]
        %v340 = vld [vmem:[%s338 + $0x4] sm:$0xf]
        %v341 = vld [vmem:[%s338 + $0x8] sm:$0xf]
        %v342 = vld [vmem:[%s338 + $0xc] sm:$0xf]
        %v343 = vld [vmem:[%s338 + $0x10] sm:$0xf]
        %v344 = vld [vmem:[%s338 + $0x14] sm:$0xf]
        %v345 = vld [vmem:[%s338 + $0x18] sm:$0xf]
        %v346 = vld [vmem:[%s338 + $0x1c] sm:$0xf]
        %v347 = vld [vmem:[%s338 + $0x20] sm:$0xf]
        %v348 = vld [vmem:[%s338 + $0x24] sm:$0xf]
        %v349 = vld [vmem:[%s338 + $0x28] sm:$0xf]
        %v350 = vld [vmem:[%s338 + $0x2c] sm:$0xf]
        %v351 = vld [vmem:[%s338 + $0x30] sm:$0xf]
        %v352 = vld [vmem:[%s338 + $0x34] sm:$0xf]
        %v353 = vld [vmem:[%s338 + $0x38] sm:$0xf]
        %v354 = vld [vmem:[%s338 + $0x3c] sm:$0xf]
        %v355 = vld [vmem:[%s291] sm:$0xff]
        %v356 = vld [vmem:[%s291 + $0x8] sm:$0xff]
        %v357 = vld [vmem:[%s291 + $0x10] sm:$0xff]
        %v358 = vld [vmem:[%s291 + $0x18] sm:$0xff]
        %v359 = vld [vmem:[%s291 + $0x20] sm:$0xff]
        %v360 = vld [vmem:[%s291 + $0x28] sm:$0xff]
        %v361 = vld [vmem:[%s291 + $0x30] sm:$0xff]
        %v362 = vld [vmem:[%s291 + $0x38] sm:$0xff]
        %v363 = vld [vmem:[%s291 + $0x40] sm:$0xff]
        %v364 = vld [vmem:[%s291 + $0x48] sm:$0xff]
        %v365 = vld [vmem:[%s291 + $0x50] sm:$0xff]
        %v366 = vld [vmem:[%s291 + $0x58] sm:$0xff]
        %v367 = vld [vmem:[%s291 + $0x60] sm:$0xff]
        %v368 = vld [vmem:[%s291 + $0x68] sm:$0xff]
        %v369 = vld [vmem:[%s291 + $0x70] sm:$0xff]
        %v370 = vld [vmem:[%s291 + $0x78] sm:$0xff]
        %v371 = vld [vmem:[%s282] sm:$0xf]
        %v372 = vld [vmem:[%s282 + $0x4] sm:$0xf]
        %v373 = vld [vmem:[%s282 + $0x8] sm:$0xf]
        %v374 = vld [vmem:[%s282 + $0xc] sm:$0xf]
        %v375 = vld [vmem:[%s282 + $0x10] sm:$0xf]
        %v376 = vld [vmem:[%s282 + $0x14] sm:$0xf]
        %v377 = vld [vmem:[%s282 + $0x18] sm:$0xf]
        %v378 = vld [vmem:[%s282 + $0x1c] sm:$0xf]
        %v379 = vld [vmem:[%s282 + $0x20] sm:$0xf]
        %v380 = vld [vmem:[%s282 + $0x24] sm:$0xf]
        %v381 = vld [vmem:[%s282 + $0x28] sm:$0xf]
        %v382 = vld [vmem:[%s282 + $0x2c] sm:$0xf]
        %v383 = vld [vmem:[%s282 + $0x30] sm:$0xf]
        %v384 = vld [vmem:[%s282 + $0x34] sm:$0xf]
        %v385 = vld [vmem:[%s282 + $0x38] sm:$0xf]
        %v386 = vld [vmem:[%s282 + $0x3c] sm:$0xf]
        %v387 = vld [vmem:[%s282 + $0x40] sm:$0xf]
        %v388 = vld [vmem:[%s282 + $0x44] sm:$0xf]
        %v389 = vld [vmem:[%s282 + $0x48] sm:$0xf]
        %v390 = vld [vmem:[%s282 + $0x4c] sm:$0xf]
        %v391 = vld [vmem:[%s282 + $0x50] sm:$0xf]
        %v392 = vld [vmem:[%s282 + $0x54] sm:$0xf]
        %v393 = vld [vmem:[%s282 + $0x58] sm:$0xf]
        %v394 = vld [vmem:[%s282 + $0x5c] sm:$0xf]
        %v395 = vld [vmem:[%s282 + $0x60] sm:$0xf]
        %v396 = vld [vmem:[%s282 + $0x64] sm:$0xf]
        %v397 = vld [vmem:[%s282 + $0x68] sm:$0xf]
        %v398 = vld [vmem:[%s282 + $0x6c] sm:$0xf]
        %v399 = vld [vmem:[%s282 + $0x70] sm:$0xf]
        %v400 = vld [vmem:[%s282 + $0x74] sm:$0xf]
        %v401 = vld [vmem:[%s282 + $0x78] sm:$0xf]
        %v402 = vld [vmem:[%s282 + $0x7c] sm:$0xf]
        %v419 = vunpack.c.l.b16 %v355
        %v420 = vunpack.c.h.b16 %v355
        %v421 = vunpack.c.l.b16 %v356
        %v422 = vunpack.c.h.b16 %v356
        %v423 = vunpack.c.l.b16 %v357
        %v424 = vunpack.c.h.b16 %v357
        %v425 = vunpack.c.l.b16 %v358
        %v426 = vunpack.c.h.b16 %v358
        %v427 = vunpack.c.l.b16 %v359
        %v428 = vunpack.c.h.b16 %v359
        %v429 = vunpack.c.l.b16 %v360
        %v430 = vunpack.c.h.b16 %v360
        %v431 = vunpack.c.l.b16 %v361
        %v432 = vunpack.c.h.b16 %v361
        %v433 = vunpack.c.l.b16 %v362
        %v434 = vunpack.c.h.b16 %v362
        %v435 = vunpack.c.l.b16 %v363
        %v436 = vunpack.c.h.b16 %v363
        %v437 = vunpack.c.l.b16 %v364
        %v438 = vunpack.c.h.b16 %v364
        %v439 = vunpack.c.l.b16 %v365
        %v440 = vunpack.c.h.b16 %v365
        %v441 = vunpack.c.l.b16 %v366
        %v442 = vunpack.c.h.b16 %v366
        %v443 = vunpack.c.l.b16 %v367
        %v444 = vunpack.c.h.b16 %v367
        %v445 = vunpack.c.l.b16 %v368
        %v446 = vunpack.c.h.b16 %v368
        %v447 = vunpack.c.l.b16 %v369
        %v448 = vunpack.c.h.b16 %v369
        %v449 = vunpack.c.l.b16 %v370
        %v450 = vunpack.c.h.b16 %v370
        %v451 = vpack.c.b16 %v421, %v419
        %v452 = vpack.c.b16 %v422, %v420
        %v453 = vpack.c.b16 %v425, %v423
        %v454 = vpack.c.b16 %v426, %v424
        %v455 = vpack.c.b16 %v429, %v427
        %v456 = vpack.c.b16 %v430, %v428
        %v457 = vpack.c.b16 %v433, %v431
        %v458 = vpack.c.b16 %v434, %v432
        %v459 = vpack.c.b16 %v437, %v435
        %v460 = vpack.c.b16 %v438, %v436
        %v461 = vpack.c.b16 %v441, %v439
        %v462 = vpack.c.b16 %v442, %v440
        %v463 = vpack.c.b16 %v445, %v443
        %v464 = vpack.c.b16 %v446, %v444
        %v465 = vpack.c.b16 %v449, %v447
        %v466 = vpack.c.b16 %v450, %v448
        %v515 = vunpack.c.l.b16 %v371
        %v516 = vunpack.c.l.b16 %v372
        %v517 = vunpack.c.l.b16 %v373
        %v518 = vunpack.c.l.b16 %v374
        %v519 = vunpack.c.l.b16 %v375
        %v520 = vunpack.c.l.b16 %v376
        %v521 = vunpack.c.l.b16 %v377
        %v522 = vunpack.c.l.b16 %v378
        %v523 = vunpack.c.l.b16 %v379
        %v524 = vunpack.c.l.b16 %v380
        %v525 = vunpack.c.l.b16 %v381
        %v526 = vunpack.c.l.b16 %v382
        %v527 = vunpack.c.l.b16 %v383
        %v528 = vunpack.c.l.b16 %v384
        %v529 = vunpack.c.l.b16 %v385
        %v530 = vunpack.c.l.b16 %v386
        %v531 = vunpack.c.l.b16 %v387
        %v532 = vunpack.c.l.b16 %v388
        %v533 = vunpack.c.l.b16 %v389
        %v534 = vunpack.c.l.b16 %v390
        %v535 = vunpack.c.l.b16 %v391
        %v536 = vunpack.c.l.b16 %v392
        %v537 = vunpack.c.l.b16 %v393
        %v538 = vunpack.c.l.b16 %v394
        %v539 = vunpack.c.l.b16 %v395
        %v540 = vunpack.c.l.b16 %v396
        %v541 = vunpack.c.l.b16 %v397
        %v542 = vunpack.c.l.b16 %v398
        %v543 = vunpack.c.l.b16 %v399
        %v544 = vunpack.c.l.b16 %v400
        %v545 = vunpack.c.l.b16 %v401
        %v546 = vunpack.c.l.b16 %v402
        %v547 = vpack.c.b16 %v516, %v515
        %v548 = vpack.c.b16 %v518, %v517
        %v549 = vpack.c.b16 %v520, %v519
        %v550 = vpack.c.b16 %v522, %v521
        %v551 = vpack.c.b16 %v524, %v523
        %v552 = vpack.c.b16 %v526, %v525
        %v553 = vpack.c.b16 %v528, %v527
        %v554 = vpack.c.b16 %v530, %v529
        %v555 = vpack.c.b16 %v532, %v531
        %v556 = vpack.c.b16 %v534, %v533
        %v557 = vpack.c.b16 %v536, %v535
        %v558 = vpack.c.b16 %v538, %v537
        %v559 = vpack.c.b16 %v540, %v539
        %v560 = vpack.c.b16 %v542, %v541
        %v561 = vpack.c.b16 %v544, %v543
        %v562 = vpack.c.b16 %v546, %v545
        %579 = vmatprep.subr.bf16.mxu0 0
        %580 = vmatpush1.bf16.msra.mxu0 %v554
        %581 = vmatprep.subr.bf16.mxu0 0
        %582 = vmatpush1.bf16.msra.mxu0 %v553
        %583 = vmatprep.subr.bf16.mxu0 0
        %584 = vmatpush1.bf16.msra.mxu0 %v552
        %585 = vmatprep.subr.bf16.mxu0 0
        %586 = vmatpush1.bf16.msra.mxu0 %v551
        %587 = vmatprep.subr.bf16.mxu0 0
        %588 = vmatpush1.bf16.msra.mxu0 %v550
        %589 = vmatprep.subr.bf16.mxu0 0
        %590 = vmatpush1.bf16.msra.mxu0 %v549
        %591 = vmatprep.subr.bf16.mxu0 0
        %592 = vmatpush1.bf16.msra.mxu0 %v548
        %593 = vmatprep.subr.bf16.mxu0 0
        %594 = vmatpush1.bf16.msra.mxu0 %v547
        %595 = vmatprep.subr.bf16.mxu0 0
        %596 = vmatpush2.bf16.msra.mxu0 %v562
        %597 = vmatprep.subr.bf16.mxu0 0
        %598 = vmatpush2.bf16.msra.mxu0 %v561
        %599 = vmatprep.subr.bf16.mxu0 0
        %600 = vmatpush2.bf16.msra.mxu0 %v560
        %601 = vmatprep.subr.bf16.mxu0 0
        %602 = vmatpush2.bf16.msra.mxu0 %v559
        %603 = vmatprep.subr.bf16.mxu0 0
        %604 = vmatpush2.bf16.msra.mxu0 %v558
        %605 = vmatprep.subr.bf16.mxu0 0
        %606 = vmatpush2.bf16.msra.mxu0 %v557
        %607 = vmatprep.subr.bf16.mxu0 0
        %608 = vmatpush2.bf16.msra.mxu0 %v556
        %609 = vmatprep.subr.bf16.mxu0 0
        %610 = vmatpush2.bf16.msra.mxu0 %v555
        %611 = vmatprep.mubr.bf16.mxu0 %v452
        %612 = vmatmul.mubr.bf16.gmra.mxu0 %v451
        %v613 = vpop.f32.mrf.mxu0
        %v614 = vadd.f32 0.0, %v613
        %v615 = vpop.f32.mrf.mxu0
        %v616 = vpop.f32.mrf.mxu0
        %v617 = vadd.f32 0.0, %v616
        %v618 = vpop.f32.mrf.mxu0
        %619 = vmatprep.mubr.bf16.mxu0 %v454
        %620 = vmatmul.mubr.bf16.gmra.mxu0 %v453
        %v621 = vpop.f32.mrf.mxu0
        %v622 = vadd.f32 0.0, %v621
        %v623 = vpop.f32.mrf.mxu0
        %v624 = vpop.f32.mrf.mxu0
        %v625 = vadd.f32 0.0, %v624
        %v626 = vpop.f32.mrf.mxu0
        %627 = vmatprep.mubr.bf16.mxu0 %v456
        %628 = vmatmul.mubr.bf16.gmra.mxu0 %v455
        %v629 = vpop.f32.mrf.mxu0
        %v630 = vadd.f32 0.0, %v629
        %v631 = vpop.f32.mrf.mxu0
        %v632 = vpop.f32.mrf.mxu0
        %v633 = vadd.f32 0.0, %v632
        %v634 = vpop.f32.mrf.mxu0
        %635 = vmatprep.mubr.bf16.mxu0 %v458
        %636 = vmatmul.mubr.bf16.gmra.mxu0 %v457
        %v637 = vpop.f32.mrf.mxu0
        %v638 = vadd.f32 0.0, %v637
        %v639 = vpop.f32.mrf.mxu0
        %v640 = vpop.f32.mrf.mxu0
        %v641 = vadd.f32 0.0, %v640
        %v642 = vpop.f32.mrf.mxu0
        %643 = vmatprep.mubr.bf16.mxu0 %v460
        %644 = vmatmul.mubr.bf16.gmra.mxu0 %v459
        %v645 = vpop.f32.mrf.mxu0
        %v646 = vadd.f32 0.0, %v645
        %v647 = vpop.f32.mrf.mxu0
        %v648 = vpop.f32.mrf.mxu0
        %v649 = vadd.f32 0.0, %v648
        %v650 = vpop.f32.mrf.mxu0
        %651 = vmatprep.mubr.bf16.mxu0 %v462
        %652 = vmatmul.mubr.bf16.gmra.mxu0 %v461
        %v653 = vpop.f32.mrf.mxu0
        %v654 = vadd.f32 0.0, %v653
        %v655 = vpop.f32.mrf.mxu0
        %v656 = vpop.f32.mrf.mxu0
        %v657 = vadd.f32 0.0, %v656
        %v658 = vpop.f32.mrf.mxu0
        %659 = vmatprep.mubr.bf16.mxu0 %v464
        %660 = vmatmul.mubr.bf16.gmra.mxu0 %v463
        %v661 = vpop.f32.mrf.mxu0
        %v662 = vadd.f32 0.0, %v661
        %v663 = vpop.f32.mrf.mxu0
        %v664 = vpop.f32.mrf.mxu0
        %v665 = vadd.f32 0.0, %v664
        %v666 = vpop.f32.mrf.mxu0
        %667 = vmatprep.mubr.bf16.mxu0 %v466
        %668 = vmatmul.mubr.bf16.gmra.mxu0 %v465
        %v669 = vpop.f32.mrf.mxu0
        %v670 = vadd.f32 0.0, %v669
        %v671 = vpop.f32.mrf.mxu0
        %v672 = vpop.f32.mrf.mxu0
        %v673 = vadd.f32 0.0, %v672
        %v674 = vpop.f32.mrf.mxu0
        %675 = vdwg.mxu0
        %v676 = vld [vmem:[#allocation7] sm:$0xf]
        %v677 = vld [vmem:[#allocation7 + $0x4] sm:$0xf]
        %v678 = vld [vmem:[#allocation7 + $0x8] sm:$0xf]
        %v679 = vld [vmem:[#allocation7 + $0xc] sm:$0xf]
        %v680 = vld [vmem:[#allocation7 + $0x10] sm:$0xf]
        %v681 = vld [vmem:[#allocation7 + $0x14] sm:$0xf]
        %v682 = vld [vmem:[#allocation7 + $0x18] sm:$0xf]
        %v683 = vld [vmem:[#allocation7 + $0x1c] sm:$0xf]
        %v684 = vld [vmem:[#allocation7 + $0x20] sm:$0xf]
        %v685 = vld [vmem:[#allocation7 + $0x24] sm:$0xf]
        %v686 = vld [vmem:[#allocation7 + $0x28] sm:$0xf]
        %v687 = vld [vmem:[#allocation7 + $0x2c] sm:$0xf]
        %v688 = vld [vmem:[#allocation7 + $0x30] sm:$0xf]
        %v689 = vld [vmem:[#allocation7 + $0x34] sm:$0xf]
        %v690 = vld [vmem:[#allocation7 + $0x38] sm:$0xf]
        %v691 = vld [vmem:[#allocation7 + $0x3c] sm:$0xf]
        %v692 = vpack.c.bf16 %v617, %v614
        %v693 = vpack.c.bf16 %v625, %v622
        %v694 = vpack.c.bf16 %v633, %v630
        %v695 = vpack.c.bf16 %v641, %v638
        %v696 = vpack.c.bf16 %v649, %v646
        %v697 = vpack.c.bf16 %v657, %v654
        %v698 = vpack.c.bf16 %v665, %v662
        %v699 = vpack.c.bf16 %v673, %v670
        %v700 = vld [vmem:[#allocation8] sm:$0xf]
        %v701 = vld [vmem:[#allocation8 + $0x4] sm:$0xf]
        %v702 = vld [vmem:[#allocation8 + $0x8] sm:$0xf]
        %v703 = vld [vmem:[#allocation8 + $0xc] sm:$0xf]
        %v704 = vld [vmem:[#allocation8 + $0x10] sm:$0xf]
        %v705 = vld [vmem:[#allocation8 + $0x14] sm:$0xf]
        %v706 = vld [vmem:[#allocation8 + $0x18] sm:$0xf]
        %v707 = vld [vmem:[#allocation8 + $0x1c] sm:$0xf]
        %v708 = vld [vmem:[#allocation8 + $0x20] sm:$0xf]
        %v709 = vld [vmem:[#allocation8 + $0x24] sm:$0xf]
        %v710 = vld [vmem:[#allocation8 + $0x28] sm:$0xf]
        %v711 = vld [vmem:[#allocation8 + $0x2c] sm:$0xf]
        %v712 = vld [vmem:[#allocation8 + $0x30] sm:$0xf]
        %v713 = vld [vmem:[#allocation8 + $0x34] sm:$0xf]
        %v714 = vld [vmem:[#allocation8 + $0x38] sm:$0xf]
        %v715 = vld [vmem:[#allocation8 + $0x3c] sm:$0xf]
        %v732 = vunpack.c.l.b16 %v700
        %v733 = vunpack.c.l.b16 %v701
        %v734 = vunpack.c.l.b16 %v702
        %v735 = vunpack.c.l.b16 %v703
        %v736 = vunpack.c.l.b16 %v704
        %v737 = vunpack.c.l.b16 %v705
        %v738 = vunpack.c.l.b16 %v706
        %v739 = vunpack.c.l.b16 %v707
        %v740 = vunpack.c.l.b16 %v708
        %v741 = vunpack.c.l.b16 %v709
        %v742 = vunpack.c.l.b16 %v710
        %v743 = vunpack.c.l.b16 %v711
        %v744 = vunpack.c.l.b16 %v712
        %v745 = vunpack.c.l.b16 %v713
        %v746 = vunpack.c.l.b16 %v714
        %v747 = vunpack.c.l.b16 %v715
        %v748 = vpack.c.b16 %v733, %v732
        %v749 = vpack.c.b16 %v735, %v734
        %v750 = vpack.c.b16 %v737, %v736
        %v751 = vpack.c.b16 %v739, %v738
        %v752 = vpack.c.b16 %v741, %v740
        %v753 = vpack.c.b16 %v743, %v742
        %v754 = vpack.c.b16 %v745, %v744
        %v755 = vpack.c.b16 %v747, %v746
        %764 = vmatprep.subr.bf16.mxu0 0
        %765 = vmatpush1.bf16.msra.mxu0 %v755
        %766 = vmatprep.subr.bf16.mxu0 0
        %767 = vmatpush1.bf16.msra.mxu0 %v754
        %768 = vmatprep.subr.bf16.mxu0 0
        %769 = vmatpush1.bf16.msra.mxu0 %v753
        %770 = vmatprep.subr.bf16.mxu0 0
        %771 = vmatpush1.bf16.msra.mxu0 %v752
        %772 = vmatprep.subr.bf16.mxu0 0
        %773 = vmatpush1.bf16.msra.mxu0 %v751
        %774 = vmatprep.subr.bf16.mxu0 0
        %775 = vmatpush1.bf16.msra.mxu0 %v750
        %776 = vmatprep.subr.bf16.mxu0 0
        %777 = vmatpush1.bf16.msra.mxu0 %v749
        %778 = vmatprep.subr.bf16.mxu0 0
        %779 = vmatpush1.bf16.msra.mxu0 %v748
        %780 = vmatprep.subr.bf16.mxu0 0
        %781 = vmatpush2.bf16.msra.mxu0 0
        %782 = vmatprep.subr.bf16.mxu0 0
        %783 = vmatpush2.bf16.msra.mxu0 0
        %784 = vmatprep.subr.bf16.mxu0 0
        %785 = vmatpush2.bf16.msra.mxu0 0
        %786 = vmatprep.subr.bf16.mxu0 0
        %787 = vmatpush2.bf16.msra.mxu0 0
        %788 = vmatprep.subr.bf16.mxu0 0
        %789 = vmatpush2.bf16.msra.mxu0 0
        %790 = vmatprep.subr.bf16.mxu0 0
        %791 = vmatpush2.bf16.msra.mxu0 0
        %792 = vmatprep.subr.bf16.mxu0 0
        %793 = vmatpush2.bf16.msra.mxu0 0
        %794 = vmatprep.subr.bf16.mxu0 0
        %795 = vmatpush2.bf16.msra.mxu0 0
        %796 = vmatprep.mubr.bf16.mxu0 0
        %797 = vmatmul.mubr.bf16.gmra.mxu0 %v692
        %v798 = vpop.f32.mrf.mxu0
        %v799 = vadd.f32 0.0, %v798
        %v800 = vpop.f32.mrf.mxu0
        %v801 = vpop.f32.mrf.mxu0
        %v802 = vadd.f32 0.0, %v801
        %v803 = vpop.f32.mrf.mxu0
        %804 = vmatprep.mubr.bf16.mxu0 0
        %805 = vmatmul.mubr.bf16.gmra.mxu0 %v693
        %v806 = vpop.f32.mrf.mxu0
        %v807 = vadd.f32 0.0, %v806
        %v808 = vpop.f32.mrf.mxu0
        %v809 = vpop.f32.mrf.mxu0
        %v810 = vadd.f32 0.0, %v809
        %v811 = vpop.f32.mrf.mxu0
        %812 = vmatprep.mubr.bf16.mxu0 0
        %813 = vmatmul.mubr.bf16.gmra.mxu0 %v694
        %v814 = vpop.f32.mrf.mxu0
        %v815 = vadd.f32 0.0, %v814
        %v816 = vpop.f32.mrf.mxu0
        %v817 = vpop.f32.mrf.mxu0
        %v818 = vadd.f32 0.0, %v817
        %v819 = vpop.f32.mrf.mxu0
        %820 = vmatprep.mubr.bf16.mxu0 0
        %821 = vmatmul.mubr.bf16.gmra.mxu0 %v695
        %v822 = vpop.f32.mrf.mxu0
        %v823 = vadd.f32 0.0, %v822
        %v824 = vpop.f32.mrf.mxu0
        %v825 = vpop.f32.mrf.mxu0
        %v826 = vadd.f32 0.0, %v825
        %v827 = vpop.f32.mrf.mxu0
        %828 = vmatprep.mubr.bf16.mxu0 0
        %829 = vmatmul.mubr.bf16.gmra.mxu0 %v696
        %v830 = vpop.f32.mrf.mxu0
        %v831 = vadd.f32 0.0, %v830
        %v832 = vpop.f32.mrf.mxu0
        %v833 = vpop.f32.mrf.mxu0
        %v834 = vadd.f32 0.0, %v833
        %v835 = vpop.f32.mrf.mxu0
        %836 = vmatprep.mubr.bf16.mxu0 0
        %837 = vmatmul.mubr.bf16.gmra.mxu0 %v697
        %v838 = vpop.f32.mrf.mxu0
        %v839 = vadd.f32 0.0, %v838
        %v840 = vpop.f32.mrf.mxu0
        %v841 = vpop.f32.mrf.mxu0
        %v842 = vadd.f32 0.0, %v841
        %v843 = vpop.f32.mrf.mxu0
        %844 = vmatprep.mubr.bf16.mxu0 0
        %845 = vmatmul.mubr.bf16.gmra.mxu0 %v698
        %v846 = vpop.f32.mrf.mxu0
        %v847 = vadd.f32 0.0, %v846
        %v848 = vpop.f32.mrf.mxu0
        %v849 = vpop.f32.mrf.mxu0
        %v850 = vadd.f32 0.0, %v849
        %v851 = vpop.f32.mrf.mxu0
        %852 = vmatprep.mubr.bf16.mxu0 0
        %853 = vmatmul.mubr.bf16.gmra.mxu0 %v699
        %v854 = vpop.f32.mrf.mxu0
        %v855 = vadd.f32 0.0, %v854
        %v856 = vpop.f32.mrf.mxu0
        %v857 = vpop.f32.mrf.mxu0
        %v858 = vadd.f32 0.0, %v857
        %v859 = vpop.f32.mrf.mxu0
        %860 = vdwg.mxu0
        %v877 = vunpack.c.l.b16 %v339
        %v878 = vunpack.c.l.b16 %v340
        %v879 = vunpack.c.l.b16 %v341
        %v880 = vunpack.c.l.b16 %v342
        %v881 = vunpack.c.l.b16 %v343
        %v882 = vunpack.c.l.b16 %v344
        %v883 = vunpack.c.l.b16 %v345
        %v884 = vunpack.c.l.b16 %v346
        %v885 = vunpack.c.l.b16 %v347
        %v886 = vunpack.c.l.b16 %v348
        %v887 = vunpack.c.l.b16 %v349
        %v888 = vunpack.c.l.b16 %v350
        %v889 = vunpack.c.l.b16 %v351
        %v890 = vunpack.c.l.b16 %v352
        %v891 = vunpack.c.l.b16 %v353
        %v892 = vunpack.c.l.b16 %v354
        %v893 = vpack.c.b16 %v878, %v877
        %v894 = vpack.c.b16 %v880, %v879
        %v895 = vpack.c.b16 %v882, %v881
        %v896 = vpack.c.b16 %v884, %v883
        %v897 = vpack.c.b16 %v886, %v885
        %v898 = vpack.c.b16 %v888, %v887
        %v899 = vpack.c.b16 %v890, %v889
        %v900 = vpack.c.b16 %v892, %v891
        %v925 = vunpack.c.l.b16 %v676
        %v926 = vunpack.c.l.b16 %v677
        %v927 = vunpack.c.l.b16 %v678
        %v928 = vunpack.c.l.b16 %v679
        %v929 = vunpack.c.l.b16 %v680
        %v930 = vunpack.c.l.b16 %v681
        %v931 = vunpack.c.l.b16 %v682
        %v932 = vunpack.c.l.b16 %v683
        %v933 = vunpack.c.l.b16 %v684
        %v934 = vunpack.c.l.b16 %v685
        %v935 = vunpack.c.l.b16 %v686
        %v936 = vunpack.c.l.b16 %v687
        %v937 = vunpack.c.l.b16 %v688
        %v938 = vunpack.c.l.b16 %v689
        %v939 = vunpack.c.l.b16 %v690
        %v940 = vunpack.c.l.b16 %v691
        %v941 = vpack.c.b16 %v926, %v925
        %v942 = vpack.c.b16 %v928, %v927
        %v943 = vpack.c.b16 %v930, %v929
        %v944 = vpack.c.b16 %v932, %v931
        %v945 = vpack.c.b16 %v934, %v933
        %v946 = vpack.c.b16 %v936, %v935
        %v947 = vpack.c.b16 %v938, %v937
        %v948 = vpack.c.b16 %v940, %v939
        %957 = vmatprep.subr.bf16.mxu0 0
        %958 = vmatpush1.bf16.msra.mxu0 %v948
        %959 = vmatprep.subr.bf16.mxu0 0
        %960 = vmatpush1.bf16.msra.mxu0 %v947
        %961 = vmatprep.subr.bf16.mxu0 0
        %962 = vmatpush1.bf16.msra.mxu0 %v946
        %963 = vmatprep.subr.bf16.mxu0 0
        %964 = vmatpush1.bf16.msra.mxu0 %v945
        %965 = vmatprep.subr.bf16.mxu0 0
        %966 = vmatpush1.bf16.msra.mxu0 %v944
        %967 = vmatprep.subr.bf16.mxu0 0
        %968 = vmatpush1.bf16.msra.mxu0 %v943
        %969 = vmatprep.subr.bf16.mxu0 0
        %970 = vmatpush1.bf16.msra.mxu0 %v942
        %971 = vmatprep.subr.bf16.mxu0 0
        %972 = vmatpush1.bf16.msra.mxu0 %v941
        %973 = vmatprep.subr.bf16.mxu0 0
        %974 = vmatpush2.bf16.msra.mxu0 0
        %975 = vmatprep.subr.bf16.mxu0 0
        %976 = vmatpush2.bf16.msra.mxu0 0
        %977 = vmatprep.subr.bf16.mxu0 0
        %978 = vmatpush2.bf16.msra.mxu0 0
        %979 = vmatprep.subr.bf16.mxu0 0
        %980 = vmatpush2.bf16.msra.mxu0 0
        %981 = vmatprep.subr.bf16.mxu0 0
        %982 = vmatpush2.bf16.msra.mxu0 0
        %983 = vmatprep.subr.bf16.mxu0 0
        %984 = vmatpush2.bf16.msra.mxu0 0
        %985 = vmatprep.subr.bf16.mxu0 0
        %986 = vmatpush2.bf16.msra.mxu0 0
        %987 = vmatprep.subr.bf16.mxu0 0
        %988 = vmatpush2.bf16.msra.mxu0 0
        %989 = vmatprep.mubr.bf16.mxu0 0
        %990 = vmatmul.mubr.bf16.gmra.mxu0 %v893
        %v991 = vpop.f32.mrf.mxu0
        %v992 = vadd.f32 %v799, %v991
        %v993 = vpop.f32.mrf.mxu0
        %v994 = vpop.f32.mrf.mxu0
        %v995 = vadd.f32 %v802, %v994
        %v996 = vpop.f32.mrf.mxu0
        %997 = vmatprep.mubr.bf16.mxu0 0
        %998 = vmatmul.mubr.bf16.gmra.mxu0 %v894
        %v999 = vpop.f32.mrf.mxu0
        %v1000 = vadd.f32 %v807, %v999
        %v1001 = vpop.f32.mrf.mxu0
        %v1002 = vpop.f32.mrf.mxu0
        %v1003 = vadd.f32 %v810, %v1002
        %v1004 = vpop.f32.mrf.mxu0
        %1005 = vmatprep.mubr.bf16.mxu0 0
        %1006 = vmatmul.mubr.bf16.gmra.mxu0 %v895
        %v1007 = vpop.f32.mrf.mxu0
        %v1008 = vadd.f32 %v815, %v1007
        %v1009 = vpop.f32.mrf.mxu0
        %v1010 = vpop.f32.mrf.mxu0
        %v1011 = vadd.f32 %v818, %v1010
        %v1012 = vpop.f32.mrf.mxu0
        %1013 = vmatprep.mubr.bf16.mxu0 0
        %1014 = vmatmul.mubr.bf16.gmra.mxu0 %v896
        %v1015 = vpop.f32.mrf.mxu0
        %v1016 = vadd.f32 %v823, %v1015
        %v1017 = vpop.f32.mrf.mxu0
        %v1018 = vpop.f32.mrf.mxu0
        %v1019 = vadd.f32 %v826, %v1018
        %v1020 = vpop.f32.mrf.mxu0
        %1021 = vmatprep.mubr.bf16.mxu0 0
        %1022 = vmatmul.mubr.bf16.gmra.mxu0 %v897
        %v1023 = vpop.f32.mrf.mxu0
        %v1024 = vadd.f32 %v831, %v1023
        %v1025 = vpop.f32.mrf.mxu0
        %v1026 = vpop.f32.mrf.mxu0
        %v1027 = vadd.f32 %v834, %v1026
        %v1028 = vpop.f32.mrf.mxu0
        %1029 = vmatprep.mubr.bf16.mxu0 0
        %1030 = vmatmul.mubr.bf16.gmra.mxu0 %v898
        %v1031 = vpop.f32.mrf.mxu0
        %v1032 = vadd.f32 %v839, %v1031
        %v1033 = vpop.f32.mrf.mxu0
        %v1034 = vpop.f32.mrf.mxu0
        %v1035 = vadd.f32 %v842, %v1034
        %v1036 = vpop.f32.mrf.mxu0
        %1037 = vmatprep.mubr.bf16.mxu0 0
        %1038 = vmatmul.mubr.bf16.gmra.mxu0 %v899
        %v1039 = vpop.f32.mrf.mxu0
        %v1040 = vadd.f32 %v847, %v1039
        %v1041 = vpop.f32.mrf.mxu0
        %v1042 = vpop.f32.mrf.mxu0
        %v1043 = vadd.f32 %v850, %v1042
        %v1044 = vpop.f32.mrf.mxu0
        %1045 = vmatprep.mubr.bf16.mxu0 0
        %1046 = vmatmul.mubr.bf16.gmra.mxu0 %v900
        %v1047 = vpop.f32.mrf.mxu0
        %v1048 = vadd.f32 %v855, %v1047
        %v1049 = vpop.f32.mrf.mxu0
        %v1050 = vpop.f32.mrf.mxu0
        %v1051 = vadd.f32 %v858, %v1050
        %v1052 = vpop.f32.mrf.mxu0
        %1053 = vdwg.mxu0
        %v1054 = vld [vmem:[%s4] sm:$0x1]
        %v1056 = vlaneseq
        %v1057 = vshrl.u32 %v1056, 7
        %v1058 = vsub.s32 0, %v1057
        %v1059 = vrot.slane %v1054, %v1058
        %v1061 = vadd.f32 %v992, %v1059
        %v1062 = vadd.f32 %v995, %v1059
        %v1063 = vadd.f32 %v1000, %v1059
        %v1064 = vadd.f32 %v1003, %v1059
        %v1065 = vadd.f32 %v1008, %v1059
        %v1066 = vadd.f32 %v1011, %v1059
        %v1067 = vadd.f32 %v1016, %v1059
        %v1068 = vadd.f32 %v1019, %v1059
        %v1069 = vadd.f32 %v1024, %v1059
        %v1070 = vadd.f32 %v1027, %v1059
        %v1071 = vadd.f32 %v1032, %v1059
        %v1072 = vadd.f32 %v1035, %v1059
        %v1073 = vadd.f32 %v1040, %v1059
        %v1074 = vadd.f32 %v1043, %v1059
        %v1075 = vadd.f32 %v1048, %v1059
        %v1076 = vadd.f32 %v1051, %v1059
        %v1077 = vmax.f32 %v1061, 0.0
        %v1078 = vmax.f32 %v1062, 0.0
        %v1079 = vmax.f32 %v1063, 0.0
        %v1080 = vmax.f32 %v1064, 0.0
        %v1081 = vmax.f32 %v1065, 0.0
        %v1082 = vmax.f32 %v1066, 0.0
        %v1083 = vmax.f32 %v1067, 0.0
        %v1084 = vmax.f32 %v1068, 0.0
        %v1085 = vmax.f32 %v1069, 0.0
        %v1086 = vmax.f32 %v1070, 0.0
        %v1087 = vmax.f32 %v1071, 0.0
        %v1088 = vmax.f32 %v1072, 0.0
        %v1089 = vmax.f32 %v1073, 0.0
        %v1090 = vmax.f32 %v1074, 0.0
        %v1091 = vmax.f32 %v1075, 0.0
        %v1092 = vmax.f32 %v1076, 0.0
        %1093 = vst [vmem:[%s330] sm:$0xff] %v1077
        %1094 = vst [vmem:[%s330 + $0x8] sm:$0xff] %v1078
        %1095 = vst [vmem:[%s330 + $0x10] sm:$0xff] %v1079
        %1096 = vst [vmem:[%s330 + $0x18] sm:$0xff] %v1080
        %1097 = vst [vmem:[%s330 + $0x20] sm:$0xff] %v1081
        %1098 = vst [vmem:[%s330 + $0x28] sm:$0xff] %v1082
        %1099 = vst [vmem:[%s330 + $0x30] sm:$0xff] %v1083
        %1100 = vst [vmem:[%s330 + $0x38] sm:$0xff] %v1084
        %1101 = vst [vmem:[%s330 + $0x40] sm:$0xff] %v1085
        %1102 = vst [vmem:[%s330 + $0x48] sm:$0xff] %v1086
        %1103 = vst [vmem:[%s330 + $0x50] sm:$0xff] %v1087
        %1104 = vst [vmem:[%s330 + $0x58] sm:$0xff] %v1088
        %1105 = vst [vmem:[%s330 + $0x60] sm:$0xff] %v1089
        %1106 = vst [vmem:[%s330 + $0x68] sm:$0xff] %v1090
        %1107 = vst [vmem:[%s330 + $0x70] sm:$0xff] %v1091
        %1108 = vst [vmem:[%s330 + $0x78] sm:$0xff] %v1092
        %s1109 = sand.u32 %s165, 1
        %s1110 = scalar_lea.sflag [#allocation4], %s1109
        %s1111 = sand.u32 %s165, 1
        %s1112 = smul.addr %s1111, 128
        %s1113 = scalar_lea.vmem [#allocation10], %s1112
        // Predicated region
        $region57: #{tpu_custom_call.1} parent=39 // pred_check
          %p1114 = pneg %p175
        $region58: #{tpu_custom_call.1} parent=39 // pred_check_branch
          %1116 = sbr.rel (%p1114) target = $region60
        $region59: #{tpu_custom_call.1} parent=39 // pred_region
          %s1117 = smul.u32 16, %s31
          %s1119 = ssub.s32 2048, 2048
          %1120 = vsyncadd %s1110, %s1119
          %s1121 = smul.addr %s30, 32
          %s1122 = sadd.s32 %s1117, %s1121
          %s1123 = smul.addr %s1122, 128
          %s1124 = scalar_lea.hbm %s5, %s1123
          %s1125 = sshll.u32 %s1113, 4
          %s1126 = int_to_ptr.vmem [resolvable:$true] %s1125
          %1131 = dma.vmem_to_hbm [thread:$0]  %s1126, 2048, %s1124, %s1110, 128, 128, 8
        $region60: #{tpu_custom_call.1} parent=39 // pred_fallthru
          _
      $region40: #{tpu_custom_call.1} parent=5 // pred_fallthru
        _
      %p1132 = scmp.le.s32.totalorder 2, %s21
      // Predicated region
      $region61: #{tpu_custom_call.1} parent=5 // pred_check
        %p1133 = pneg %p1132
      $region62: #{tpu_custom_call.1} parent=5 // pred_check_branch
        %1135 = sbr.rel (%p1133) target = $region64
      $region63: #{tpu_custom_call.1} parent=5 // pred_region
        %s1136 = ssub.s32 %s21, 2
        // Predicated region
        $region65: #{tpu_custom_call.1} parent=63 // pred_check
          %p1137 = pneg %p181
        $region66: #{tpu_custom_call.1} parent=63 // pred_check_branch
          %1139 = sbr.rel (%p1137) target = $region68
        $region67: #{tpu_custom_call.1} parent=63 // pred_region
          %s1140 = sand.u32 %s166, 1
          %s1141 = scalar_lea.sflag [#allocation4], %s1140
          %s1142 = sand.u32 %s166, 1
          %s1143 = smul.addr %s1142, 128
          %s1144 = scalar_lea.vmem [#allocation10], %s1143
          %1145 = dma.done %s1141, 2048
        $region68: #{tpu_custom_call.1} parent=63 // pred_fallthru
          _
      $region64: #{tpu_custom_call.1} parent=5 // pred_fallthru
        _
    $region6: #{tpu_custom_call.1} parent=1 // loop_footer
      %s25 = sadd.s32 1, %s21
    $region7: #{tpu_custom_call.1} parent=1 // loop_footer_branch
      %20 = sbr.rel target = $region3
    $region8: #{tpu_custom_call.1} parent=1 // loop_exit
      _
    %1146 = vsyncpa [#allocation3], 1
    %s1147 = scalar_lea.sflag [#allocation3], 1
    %1148 = vsyncpa %s1147, 1
    %1149 = vsyncpa [#allocation6], 1
    %s1150 = scalar_lea.sflag [#allocation6], 1
    %1151 = vsyncpa %s1150, 1
    %1152 = vsyncpa [#allocation9], 1
    %1153 = vsyncpa [#allocation4], 1
    %s1154 = scalar_lea.sflag [#allocation4], 1
    %1155 = vsyncpa %s1154, 1

</llo_original>
